<compile_context>
chip_gen: v6e
topology: v6e:2x2x1
jax: 0.10.0
libtpu: 0.0.40
codegen_flags: <defaults>
</compile_context>

<pallas_src>
import functools
import numpy as np
import jax
import jax.numpy as jnp
from jax.experimental import pallas as pl
from jax.experimental.pallas import tpu as pltpu


def _round_up(x, m):
    return ((x + m - 1) // m) * m


# -----------------------------------------------------------------------------
# Fused kernel:  out = LeakyReLU( (x_ori_flat @ W2) + bias + residual )
# -----------------------------------------------------------------------------
def _up_residual_kernel(xo_ref, w_ref, b_ref, res_ref, o_ref, acc_ref):
    k = pl.program_id(2)

    @pl.when(k == 0)
    def _():
        acc_ref[...] = jnp.zeros_like(acc_ref)

    # bf16 operands feed the MXU at full rate; accumulation stays f32.
    acc_ref[...] += jnp.dot(
        xo_ref[...], w_ref[...], preferred_element_type=jnp.float32
    )

    @pl.when(k == pl.num_programs(2) - 1)
    def _():
        y = acc_ref[...] + b_ref[...] + res_ref[...]          # f32 epilogue
        y = jnp.where(y >= 0, y, 0.01 * y)                    # nn.LeakyReLU() default
        o_ref[...] = y.astype(o_ref.dtype)


# -----------------------------------------------------------------------------
# Parameter init (PyTorch ConvTranspose2d defaults) + hoisted weight prep
# -----------------------------------------------------------------------------
def init_up_residual(key, in_channels, out_channels):
    """ConvTranspose2d(in, out, 2, 2) params; PyTorch default U(-1/sqrt(k), 1/sqrt(k))."""
    k_w, k_b = jax.random.split(key)
    bound = 1.0 / np.sqrt(in_channels * 2 * 2)
    w = jax.random.uniform(k_w, (in_channels, out_channels, 2, 2),
                           jnp.float32, -bound, bound)
    b = jax.random.uniform(k_b, (out_channels,), jnp.float32, -bound, bound)
    return {"w": w, "b": b}


def prepare_up_residual(params):
    """Reshape/pad/bf16-cast the weight and bias ONCE (hoisted out of forward)."""
    w, b = params["w"], params["b"]
    cin, cout = w.shape[0], w.shape[1]
    K, Nn = cin, 4 * cout
    tk = min(512, _round_up(K, 128))
    tn = min(512, _round_up(Nn, 128))
    Kp, Np = _round_up(K, tk), _round_up(Nn, tn)

    # (Cin, Cout, 2, 2) -> (Cin, 2, 2, Cout) -> (Cin, 4*Cout); column order (i, j, co).
    w2 = jnp.transpose(w, (0, 2, 3, 1)).reshape(K, Nn)
    w_p = jnp.pad(w2, ((0, Kp - K), (0, Np - Nn))).astype(jnp.bfloat16)

    b4 = jnp.tile(b, 4)                                        # bias per (i, j, co) column
    b_p = jnp.pad(b4, (0, Np - Nn)).reshape(1, Np).astype(jnp.float32)

    return {"w_p": w_p, "b_p": b_p, "cin": cin, "cout": cout,
            "tk": tk, "tn": tn, "kp": Kp, "npad": Np}


# -----------------------------------------------------------------------------
# Forward (NCHW at the boundary, matching PyTorch)
# -----------------------------------------------------------------------------
def up_residual_forward(x, x_ori, prep):
    """x: (N, Cout, 2H, 2W) residual; x_ori: (N, Cin, H, W). Returns (N, Cout, 2H, 2W)."""
    N, Cin, H, W = x_ori.shape
    Cout = prep["cout"]
    assert Cin == prep["cin"]
    assert x.shape == (N, Cout, 2 * H, 2 * W)

    M, K, Nn = N * H * W, Cin, 4 * Cout
    Kp, Np = prep["kp"], prep["npad"]
    tk, tn = prep["tk"], prep["tn"]
    tm = min(512, _round_up(M, 8))
    Mp = _round_up(M, tm)

    # ---- layout glue (plain JAX) --------------------------------------------
    # x_ori NCHW -> (M, Cin), bf16 MXU operand.
    xo = jnp.transpose(x_ori, (0, 2, 3, 1)).reshape(M, K)
    xo_p = jnp.pad(xo, ((0, Mp - M), (0, Kp - K))).astype(jnp.bfloat16)

    # Residual NCHW -> (M, 4*Cout) with last-dim order (i, j, co), kept f32.
    res = jnp.transpose(x, (0, 2, 3, 1))                       # (N, 2H, 2W, Cout)
    res = res.reshape(N, H, 2, W, 2, Cout)
    res = jnp.transpose(res, (0, 1, 3, 2, 4, 5))               # (N, H, W, 2, 2, Cout)
    res = res.reshape(M, Nn).astype(jnp.float32)
    res_p = jnp.pad(res, ((0, Mp - M), (0, Np - Nn)))

    grid = (Mp // tm, Np // tn, Kp // tk)

    # Explicit VMEM budget for the chosen tiles (double-buffered inputs/outputs
    # + f32 accumulator); safe on v5e/v6e/v7x (<= 32 MiB).
    vmem_bytes = (2 * tm * tk * 2 + 2 * tk * tn * 2            # bf16 LHS / RHS
                  + 2 * tm * tn * 4                            # f32 residual
                  + 2 * tm * tn * 4                            # f32 output
                  + tm * tn * 4                                # f32 accumulator
                  + 2 * tn * 4)                                # bias
    vmem_limit = int(max(2 * vmem_bytes, 32 * 1024 * 1024))

    out = pl.pallas_call(
        _up_residual_kernel,
        out_shape=jax.ShapeDtypeStruct((Mp, Np), jnp.float32),
        grid_spec=pltpu.PrefetchScalarGridSpec(
            num_scalar_prefetch=0,
            grid=grid,
            in_specs=[
                pl.BlockSpec((tm, tk), lambda i, j, k: (i, k)),   # x_ori patches
                pl.BlockSpec((tk, tn), lambda i, j, k: (k, j)),   # weight
                pl.BlockSpec((1, tn), lambda i, j, k: (0, j)),    # bias
                pl.BlockSpec((tm, tn), lambda i, j, k: (i, j)),   # residual
            ],
            out_specs=pl.BlockSpec((tm, tn), lambda i, j, k: (i, j)),
            scratch_shapes=[pltpu.VMEM((tm, tn), jnp.float32)],
        ),
        compiler_params=pltpu.CompilerParams(
            # M/N axes parallel for megacore (v7x); K reduction is arbitrary.
            dimension_semantics=("parallel", "parallel", "arbitrary"),
            vmem_limit_bytes=vmem_limit,
        ),
    )(xo_p, prep["w_p"], prep["b_p"], res_p)

    y = out[:M, :Nn]
    # (M, 4*Cout) -> NCHW (N, Cout, 2H, 2W)
    y = y.reshape(N, H, W, 2, 2, Cout)
    y = jnp.transpose(y, (0, 1, 3, 2, 4, 5))                   # (N, H, 2, W, 2, Cout)
    y = y.reshape(N, 2 * H, 2 * W, Cout)
    return jnp.transpose(y, (0, 3, 1, 2))


# -----------------------------------------------------------------------------
if __name__ == "__main__":
    key = jax.random.PRNGKey(0)
    kp_, kx_, kxo_ = jax.random.split(key, 3)

    # Small shapes consistent with the module: x_ori (N, Cin, H, W),
    # x residual (N, Cout, 2H, 2W).
    N, Cin, Cout, H, W = 2, 64, 32, 8, 8
    params = init_up_residual(kp_, Cin, Cout)
    prep = prepare_up_residual(params)

    x_ori = jax.random.normal(kxo_, (N, Cin, H, W), jnp.float32)
    x = jax.random.normal(kx_, (N, Cout, 2 * H, 2 * W), jnp.float32)

    fwd = jax.jit(functools.partial(up_residual_forward, prep=prep))
    out = jax.block_until_ready(fwd(x, x_ori))

    assert out.shape == (N, Cout, 2 * H, 2 * W), out.shape
    assert bool(jnp.all(jnp.isfinite(out)))

    # Pure-JAX f32 reference (independent of the kernel path).
    w, b = params["w"], params["b"]
    up = jnp.einsum("nchw,cdij->ndhiwj", x_ori, w).reshape(N, Cout, 2 * H, 2 * W)
    pre = x + up + b[None, :, None, None]
    ref = jnp.where(pre >= 0, pre, 0.01 * pre)

    max_err = float(jnp.max(jnp.abs(out - ref)))
    # bf16 MXU operands -> small drift vs the f32 reference; accumulator is f32.
    assert max_err < 5e-2, f"max abs err {max_err}"

    print("KERNEL_OK")
</pallas_src>

<mosaic_0001>
module attributes {stable_mosaic.version = 11 : i64} {
  func.func @_up_residual_kernel(%arg0: i32, %arg1: i32, %arg2: i32, %arg3: memref<128x128xbf16, #tpu.memory_space<vmem>>, %arg4: memref<128x128xbf16, #tpu.memory_space<vmem>>, %arg5: memref<1x128xf32, #tpu.memory_space<vmem>>, %arg6: memref<128x128xf32, #tpu.memory_space<vmem>>, %arg7: memref<128x128xf32, #tpu.memory_space<vmem>>, %arg8: memref<128x128xf32, #tpu.memory_space<vmem>>) attributes {dimension_semantics = [#tpu.dimension_semantics<parallel>, #tpu.dimension_semantics<parallel>, #tpu.dimension_semantics<arbitrary>], iteration_bounds = array<i64: 1, 1, 1>, scalar_prefetch = 0 : i64, scratch_operands = 1 : i64, tpu.core_type = #tpu.core_type<tc>, window_params = [{transform_indices = @transform_0, window_bounds = array<i64: 128, 128>}, {transform_indices = @transform_1, window_bounds = array<i64: 128, 128>}, {transform_indices = @transform_2, window_bounds = array<i64: 1, 128>}, {transform_indices = @transform_3, window_bounds = array<i64: 128, 128>}, {transform_indices = @transform_4, window_bounds = array<i64: 128, 128>}]} {
    %c0_i32 = arith.constant 0 : i32
    %0 = arith.cmpi eq, %arg2, %c0_i32 : i32
    %1 = arith.extui %0 : i1 to i32
    %c0_i32_0 = arith.constant 0 : i32
    %2 = arith.cmpi ne, %1, %c0_i32_0 : i32
    scf.if %2 {
      %cst_10 = arith.constant 0.000000e+00 : f32
      %12 = vector.broadcast %cst_10 : f32 to vector<128x128xf32>
      %c0_11 = arith.constant 0 : index
      %c0_12 = arith.constant 0 : index
      %13 = vector.load %arg8[%c0_11, %c0_12] : memref<128x128xf32, #tpu.memory_space<vmem>>, vector<128x128xf32>
      tpu.vector_store %arg8[%c0_11, %c0_12], %12 {strides = array<i32>} : memref<128x128xf32, #tpu.memory_space<vmem>>, vector<128x128xf32>,
    } else {
    }
    %c0 = arith.constant 0 : index
    %c0_1 = arith.constant 0 : index
    %3 = vector.load %arg8[%c0, %c0_1] : memref<128x128xf32, #tpu.memory_space<vmem>>, vector<128x128xf32>
    %c0_2 = arith.constant 0 : index
    %c0_3 = arith.constant 0 : index
    %4 = vector.load %arg3[%c0_2, %c0_3] : memref<128x128xbf16, #tpu.memory_space<vmem>>, vector<128x128xbf16>
    %c0_4 = arith.constant 0 : index
    %c0_5 = arith.constant 0 : index
    %5 = vector.load %arg4[%c0_4, %c0_5] : memref<128x128xbf16, #tpu.memory_space<vmem>>, vector<128x128xbf16>
    %cst = arith.constant dense<0.000000e+00> : vector<128x128xf32>
    %6 = tpu.matmul %4, %5, %cst {dimension_numbers = #tpu.dot_dimension_numbers<[1], [0], [0], [1], [0, 0, 1, 1], [], []>} : vector<128x128xbf16>, vector<128x128xbf16>, vector<128x128xf32> -> vector<128x128xf32>
    %7 = arith.addf %3, %6 : vector<128x128xf32>
    %c0_6 = arith.constant 0 : index
    %c0_7 = arith.constant 0 : index
    %8 = vector.load %arg8[%c0_6, %c0_7] : memref<128x128xf32, #tpu.memory_space<vmem>>, vector<128x128xf32>
    tpu.vector_store %arg8[%c0_6, %c0_7], %7 {strides = array<i32>} : memref<128x128xf32, #tpu.memory_space<vmem>>, vector<128x128xf32>,
    %c0_i32_8 = arith.constant 0 : i32
    %9 = arith.cmpi eq, %arg2, %c0_i32_8 : i32
    %10 = arith.extui %9 : i1 to i32
    %c0_i32_9 = arith.constant 0 : i32
    %11 = arith.cmpi ne, %10, %c0_i32_9 : i32
    scf.if %11 {
      %c0_10 = arith.constant 0 : index
      %c0_11 = arith.constant 0 : index
      %12 = vector.load %arg8[%c0_10, %c0_11] : memref<128x128xf32, #tpu.memory_space<vmem>>, vector<128x128xf32>
      %c0_12 = arith.constant 0 : index
      %c0_13 = arith.constant 0 : index
      %13 = vector.load %arg5[%c0_12, %c0_13] : memref<1x128xf32, #tpu.memory_space<vmem>>, vector<1x128xf32>
      %14 = vector.broadcast %13 : vector<1x128xf32> to vector<128x128xf32>
      %15 = arith.addf %12, %14 : vector<128x128xf32>
      %c0_14 = arith.constant 0 : index
      %c0_15 = arith.constant 0 : index
      %16 = vector.load %arg6[%c0_14, %c0_15] : memref<128x128xf32, #tpu.memory_space<vmem>>, vector<128x128xf32>
      %17 = arith.addf %15, %16 : vector<128x128xf32>
      %cst_16 = arith.constant 0.000000e+00 : f32
      %18 = vector.broadcast %cst_16 : f32 to vector<128x128xf32>
      %19 = arith.cmpf oge, %17, %18 : vector<128x128xf32>
      %cst_17 = arith.constant 0.00999999977 : f32
      %20 = vector.broadcast %cst_17 : f32 to vector<128x128xf32>
      %21 = arith.mulf %20, %17 : vector<128x128xf32>
      %22 = arith.select %19, %17, %21 : vector<128x128xi1>, vector<128x128xf32>
      %c0_18 = arith.constant 0 : index
      %c0_19 = arith.constant 0 : index
      %23 = vector.load %arg7[%c0_18, %c0_19] : memref<128x128xf32, #tpu.memory_space<vmem>>, vector<128x128xf32>
      tpu.vector_store %arg7[%c0_18, %c0_19], %22 {strides = array<i32>} : memref<128x128xf32, #tpu.memory_space<vmem>>, vector<128x128xf32>,
    } else {
    }
    return
  }
  func.func @transform_0(%arg0: i32, %arg1: i32, %arg2: i32) -> (i32, i32) {
    %c0_i32 = arith.constant 0 : i32
    return %arg0, %arg2 : i32, i32
  }
  func.func @transform_1(%arg0: i32, %arg1: i32, %arg2: i32) -> (i32, i32) {
    %c0_i32 = arith.constant 0 : i32
    return %arg2, %arg1 : i32, i32
  }
  func.func @transform_2(%arg0: i32, %arg1: i32, %arg2: i32) -> (i32, i32) {
    %c0_i32 = arith.constant 0 : i32
    %c0_i32_0 = arith.constant 0 : i32
    return %c0_i32, %arg1 : i32, i32
  }
  func.func @transform_3(%arg0: i32, %arg1: i32, %arg2: i32) -> (i32, i32) {
    %c0_i32 = arith.constant 0 : i32
    return %arg0, %arg1 : i32, i32
  }
  func.func @transform_4(%arg0: i32, %arg1: i32, %arg2: i32) -> (i32, i32) {
    %c0_i32 = arith.constant 0 : i32
    return %arg0, %arg1 : i32, i32
  }
}

</mosaic_0001>

<llo_original>
// kernel: up_residual_forward.1
$region0: #{up_residual_forward.1}
  #allocation0 [shape = 'u32[]', space=smem, size = 0x4, offset = 0x4, fixed_abs, tag = 'smem constant byte address 0x4 - core index']
  #allocation1 [shape = 'u32[144,128]{1,0:T(1,128)}', space=vmem, size = 0x12000, scoped, tag = 'internal scratch']
  #allocation2 [shape = 'f32[128,128]{1,0:T(8,128)}', space=vmem, size = 0x10000, scoped, tag = 'scratch operand']
  %s0 = inlined_call_operand.vmem [shape: bf16[128,128], index: 0, kind: input, shape index: {}]
  %s1 = inlined_call_operand.vmem [shape: bf16[128,128], index: 1, kind: input, shape index: {}]
  %s2 = inlined_call_operand.vmem [shape: f32[1,128], index: 2, kind: input, shape index: {}]
  %s3 = inlined_call_operand.vmem [shape: f32[128,128], index: 3, kind: input, shape index: {}]
  %s4 = inlined_call_operand.vmem [shape: f32[128,128], index: 4, kind: output, shape index: {}]
  %s5 = sld [smem:[#allocation0]]
  $region34: #{up_residual_forward.1} parent=0
    _
  %s7 = ssub.s32 1, %s5
  %s8 = scalar_select 0, %s7, %s5
  // Predicated region
  $region2: #{up_residual_forward.1} parent=0 // pred_check
    _
  $region3: #{up_residual_forward.1} parent=0 // pred_check_branch
    %10 = sbr.rel (0) target = $region5
  $region4: #{up_residual_forward.1} parent=0 // pred_region
    _
  $region5: #{up_residual_forward.1} parent=0 // pred_fallthru
    _
  // Predicated region
  $region6: #{up_residual_forward.1} parent=0 // pred_check
    _
  $region7: #{up_residual_forward.1} parent=0 // pred_check_branch
    %12 = sbr.rel (0) target = $region9
  $region8: #{up_residual_forward.1} parent=0 // pred_region
    _
  $region9: #{up_residual_forward.1} parent=0 // pred_fallthru
    _
  // Predicated region
  $region10: #{up_residual_forward.1} parent=0 // pred_check
    _
  $region11: #{up_residual_forward.1} parent=0 // pred_check_branch
    %14 = sbr.rel (0) target = $region13
  $region12: #{up_residual_forward.1} parent=0 // pred_region
    _
  $region13: #{up_residual_forward.1} parent=0 // pred_fallthru
    _
  // Predicated region
  $region14: #{up_residual_forward.1} parent=0 // pred_check
    _
  $region15: #{up_residual_forward.1} parent=0 // pred_check_branch
    %16 = sbr.rel (0) target = $region17
  $region16: #{up_residual_forward.1} parent=0 // pred_region
    _
  $region17: #{up_residual_forward.1} parent=0 // pred_fallthru
    _
  %p18 = scmp.eq.s32.totalorder 0, 0
  // Predicated region
  $region18: #{up_residual_forward.1} parent=0 // pred_check
    %p19 = pneg %p18
  $region19: #{up_residual_forward.1} parent=0 // pred_check_branch
    %21 = sbr.rel (%p19) target = $region21
  $region20: #{up_residual_forward.1} parent=0 // pred_region
    %22 = vst [vmem:[#allocation2] sm:$0xff] 0.0
    %23 = vst [vmem:[#allocation2 + $0x8] sm:$0xff] 0.0
    %24 = vst [vmem:[#allocation2 + $0x10] sm:$0xff] 0.0
    %25 = vst [vmem:[#allocation2 + $0x18] sm:$0xff] 0.0
    %26 = vst [vmem:[#allocation2 + $0x20] sm:$0xff] 0.0
    %27 = vst [vmem:[#allocation2 + $0x28] sm:$0xff] 0.0
    %28 = vst [vmem:[#allocation2 + $0x30] sm:$0xff] 0.0
    %29 = vst [vmem:[#allocation2 + $0x38] sm:$0xff] 0.0
    %30 = vst [vmem:[#allocation2 + $0x40] sm:$0xff] 0.0
    %31 = vst [vmem:[#allocation2 + $0x48] sm:$0xff] 0.0
    %32 = vst [vmem:[#allocation2 + $0x50] sm:$0xff] 0.0
    %33 = vst [vmem:[#allocation2 + $0x58] sm:$0xff] 0.0
    %34 = vst [vmem:[#allocation2 + $0x60] sm:$0xff] 0.0
    %35 = vst [vmem:[#allocation2 + $0x68] sm:$0xff] 0.0
    %36 = vst [vmem:[#allocation2 + $0x70] sm:$0xff] 0.0
    %37 = vst [vmem:[#allocation2 + $0x78] sm:$0xff] 0.0
  $region21: #{up_residual_forward.1} parent=0 // pred_fallthru
    _
  %v38 = vld [vmem:[#allocation2] sm:$0xff]
  %v39 = vld [vmem:[#allocation2 + $0x8] sm:$0xff]
  %v40 = vld [vmem:[#allocation2 + $0x10] sm:$0xff]
  %v41 = vld [vmem:[#allocation2 + $0x18] sm:$0xff]
  %v42 = vld [vmem:[#allocation2 + $0x20] sm:$0xff]
  %v43 = vld [vmem:[#allocation2 + $0x28] sm:$0xff]
  %v44 = vld [vmem:[#allocation2 + $0x30] sm:$0xff]
  %v45 = vld [vmem:[#allocation2 + $0x38] sm:$0xff]
  %v46 = vld [vmem:[#allocation2 + $0x40] sm:$0xff]
  %v47 = vld [vmem:[#allocation2 + $0x48] sm:$0xff]
  %v48 = vld [vmem:[#allocation2 + $0x50] sm:$0xff]
  %v49 = vld [vmem:[#allocation2 + $0x58] sm:$0xff]
  %v50 = vld [vmem:[#allocation2 + $0x60] sm:$0xff]
  %v51 = vld [vmem:[#allocation2 + $0x68] sm:$0xff]
  %v52 = vld [vmem:[#allocation2 + $0x70] sm:$0xff]
  %v53 = vld [vmem:[#allocation2 + $0x78] sm:$0xff]
  %v54 = vld [vmem:[%s0] sm:$0xf]
  %v55 = vld [vmem:[%s0 + $0x4] sm:$0xf]
  %v56 = vld [vmem:[%s0 + $0x8] sm:$0xf]
  %v57 = vld [vmem:[%s0 + $0xc] sm:$0xf]
  %v58 = vld [vmem:[%s0 + $0x10] sm:$0xf]
  %v59 = vld [vmem:[%s0 + $0x14] sm:$0xf]
  %v60 = vld [vmem:[%s0 + $0x18] sm:$0xf]
  %v61 = vld [vmem:[%s0 + $0x1c] sm:$0xf]
  %v62 = vld [vmem:[%s0 + $0x20] sm:$0xf]
  %v63 = vld [vmem:[%s0 + $0x24] sm:$0xf]
  %v64 = vld [vmem:[%s0 + $0x28] sm:$0xf]
  %v65 = vld [vmem:[%s0 + $0x2c] sm:$0xf]
  %v66 = vld [vmem:[%s0 + $0x30] sm:$0xf]
  %v67 = vld [vmem:[%s0 + $0x34] sm:$0xf]
  %v68 = vld [vmem:[%s0 + $0x38] sm:$0xf]
  %v69 = vld [vmem:[%s0 + $0x3c] sm:$0xf]
  %v70 = vld [vmem:[%s1] sm:$0xf]
  %v71 = vld [vmem:[%s1 + $0x4] sm:$0xf]
  %v72 = vld [vmem:[%s1 + $0x8] sm:$0xf]
  %v73 = vld [vmem:[%s1 + $0xc] sm:$0xf]
  %v74 = vld [vmem:[%s1 + $0x10] sm:$0xf]
  %v75 = vld [vmem:[%s1 + $0x14] sm:$0xf]
  %v76 = vld [vmem:[%s1 + $0x18] sm:$0xf]
  %v77 = vld [vmem:[%s1 + $0x1c] sm:$0xf]
  %v78 = vld [vmem:[%s1 + $0x20] sm:$0xf]
  %v79 = vld [vmem:[%s1 + $0x24] sm:$0xf]
  %v80 = vld [vmem:[%s1 + $0x28] sm:$0xf]
  %v81 = vld [vmem:[%s1 + $0x2c] sm:$0xf]
  %v82 = vld [vmem:[%s1 + $0x30] sm:$0xf]
  %v83 = vld [vmem:[%s1 + $0x34] sm:$0xf]
  %v84 = vld [vmem:[%s1 + $0x38] sm:$0xf]
  %v85 = vld [vmem:[%s1 + $0x3c] sm:$0xf]
  %v102 = vunpack.c.l.b16 %v54
  %v103 = vunpack.c.l.b16 %v55
  %v104 = vunpack.c.l.b16 %v56
  %v105 = vunpack.c.l.b16 %v57
  %v106 = vunpack.c.l.b16 %v58
  %v107 = vunpack.c.l.b16 %v59
  %v108 = vunpack.c.l.b16 %v60
  %v109 = vunpack.c.l.b16 %v61
  %v110 = vunpack.c.l.b16 %v62
  %v111 = vunpack.c.l.b16 %v63
  %v112 = vunpack.c.l.b16 %v64
  %v113 = vunpack.c.l.b16 %v65
  %v114 = vunpack.c.l.b16 %v66
  %v115 = vunpack.c.l.b16 %v67
  %v116 = vunpack.c.l.b16 %v68
  %v117 = vunpack.c.l.b16 %v69
  %v118 = vpack.c.b16 %v103, %v102
  %v119 = vpack.c.b16 %v105, %v104
  %v120 = vpack.c.b16 %v107, %v106
  %v121 = vpack.c.b16 %v109, %v108
  %v122 = vpack.c.b16 %v111, %v110
  %v123 = vpack.c.b16 %v113, %v112
  %v124 = vpack.c.b16 %v115, %v114
  %v125 = vpack.c.b16 %v117, %v116
  %v150 = vunpack.c.l.b16 %v70
  %v151 = vunpack.c.l.b16 %v71
  %v152 = vunpack.c.l.b16 %v72
  %v153 = vunpack.c.l.b16 %v73
  %v154 = vunpack.c.l.b16 %v74
  %v155 = vunpack.c.l.b16 %v75
  %v156 = vunpack.c.l.b16 %v76
  %v157 = vunpack.c.l.b16 %v77
  %v158 = vunpack.c.l.b16 %v78
  %v159 = vunpack.c.l.b16 %v79
  %v160 = vunpack.c.l.b16 %v80
  %v161 = vunpack.c.l.b16 %v81
  %v162 = vunpack.c.l.b16 %v82
  %v163 = vunpack.c.l.b16 %v83
  %v164 = vunpack.c.l.b16 %v84
  %v165 = vunpack.c.l.b16 %v85
  %v166 = vpack.c.b16 %v151, %v150
  %v167 = vpack.c.b16 %v153, %v152
  %v168 = vpack.c.b16 %v155, %v154
  %v169 = vpack.c.b16 %v157, %v156
  %v170 = vpack.c.b16 %v159, %v158
  %v171 = vpack.c.b16 %v161, %v160
  %v172 = vpack.c.b16 %v163, %v162
  %v173 = vpack.c.b16 %v165, %v164
  %182 = vmatprep.subr.bf16.mxu0 0
  %183 = vmatpush1.bf16.msra.mxu0 %v173
  %184 = vmatprep.subr.bf16.mxu0 0
  %185 = vmatpush1.bf16.msra.mxu0 %v172
  %186 = vmatprep.subr.bf16.mxu0 0
  %187 = vmatpush1.bf16.msra.mxu0 %v171
  %188 = vmatprep.subr.bf16.mxu0 0
  %189 = vmatpush1.bf16.msra.mxu0 %v170
  %190 = vmatprep.subr.bf16.mxu0 0
  %191 = vmatpush1.bf16.msra.mxu0 %v169
  %192 = vmatprep.subr.bf16.mxu0 0
  %193 = vmatpush1.bf16.msra.mxu0 %v168
  %194 = vmatprep.subr.bf16.mxu0 0
  %195 = vmatpush1.bf16.msra.mxu0 %v167
  %196 = vmatprep.subr.bf16.mxu0 0
  %197 = vmatpush1.bf16.msra.mxu0 %v166
  %198 = vmatprep.subr.bf16.mxu0 0
  %199 = vmatpush2.bf16.msra.mxu0 0
  %200 = vmatprep.subr.bf16.mxu0 0
  %201 = vmatpush2.bf16.msra.mxu0 0
  %202 = vmatprep.subr.bf16.mxu0 0
  %203 = vmatpush2.bf16.msra.mxu0 0
  %204 = vmatprep.subr.bf16.mxu0 0
  %205 = vmatpush2.bf16.msra.mxu0 0
  %206 = vmatprep.subr.bf16.mxu0 0
  %207 = vmatpush2.bf16.msra.mxu0 0
  %208 = vmatprep.subr.bf16.mxu0 0
  %209 = vmatpush2.bf16.msra.mxu0 0
  %210 = vmatprep.subr.bf16.mxu0 0
  %211 = vmatpush2.bf16.msra.mxu0 0
  %212 = vmatprep.subr.bf16.mxu0 0
  %213 = vmatpush2.bf16.msra.mxu0 0
  %214 = vmatprep.mubr.bf16.mxu0 0
  %215 = vmatmul.mubr.bf16.gmra.mxu0 %v118
  %v216 = vpop.f32.mrf.mxu0
  %v217 = vadd.f32 0.0, %v216
  %v218 = vpop.f32.mrf.mxu0
  %v219 = vpop.f32.mrf.mxu0
  %v220 = vadd.f32 0.0, %v219
  %v221 = vpop.f32.mrf.mxu0
  %222 = vmatprep.mubr.bf16.mxu0 0
  %223 = vmatmul.mubr.bf16.gmra.mxu0 %v119
  %v224 = vpop.f32.mrf.mxu0
  %v225 = vadd.f32 0.0, %v224
  %v226 = vpop.f32.mrf.mxu0
  %v227 = vpop.f32.mrf.mxu0
  %v228 = vadd.f32 0.0, %v227
  %v229 = vpop.f32.mrf.mxu0
  %230 = vmatprep.mubr.bf16.mxu0 0
  %231 = vmatmul.mubr.bf16.gmra.mxu0 %v120
  %v232 = vpop.f32.mrf.mxu0
  %v233 = vadd.f32 0.0, %v232
  %v234 = vpop.f32.mrf.mxu0
  %v235 = vpop.f32.mrf.mxu0
  %v236 = vadd.f32 0.0, %v235
  %v237 = vpop.f32.mrf.mxu0
  %238 = vmatprep.mubr.bf16.mxu0 0
  %239 = vmatmul.mubr.bf16.gmra.mxu0 %v121
  %v240 = vpop.f32.mrf.mxu0
  %v241 = vadd.f32 0.0, %v240
  %v242 = vpop.f32.mrf.mxu0
  %v243 = vpop.f32.mrf.mxu0
  %v244 = vadd.f32 0.0, %v243
  %v245 = vpop.f32.mrf.mxu0
  %246 = vmatprep.mubr.bf16.mxu0 0
  %247 = vmatmul.mubr.bf16.gmra.mxu0 %v122
  %v248 = vpop.f32.mrf.mxu0
  %v249 = vadd.f32 0.0, %v248
  %v250 = vpop.f32.mrf.mxu0
  %v251 = vpop.f32.mrf.mxu0
  %v252 = vadd.f32 0.0, %v251
  %v253 = vpop.f32.mrf.mxu0
  %254 = vmatprep.mubr.bf16.mxu0 0
  %255 = vmatmul.mubr.bf16.gmra.mxu0 %v123
  %v256 = vpop.f32.mrf.mxu0
  %v257 = vadd.f32 0.0, %v256
  %v258 = vpop.f32.mrf.mxu0
  %v259 = vpop.f32.mrf.mxu0
  %v260 = vadd.f32 0.0, %v259
  %v261 = vpop.f32.mrf.mxu0
  %262 = vmatprep.mubr.bf16.mxu0 0
  %263 = vmatmul.mubr.bf16.gmra.mxu0 %v124
  %v264 = vpop.f32.mrf.mxu0
  %v265 = vadd.f32 0.0, %v264
  %v266 = vpop.f32.mrf.mxu0
  %v267 = vpop.f32.mrf.mxu0
  %v268 = vadd.f32 0.0, %v267
  %v269 = vpop.f32.mrf.mxu0
  %270 = vmatprep.mubr.bf16.mxu0 0
  %271 = vmatmul.mubr.bf16.gmra.mxu0 %v125
  %v272 = vpop.f32.mrf.mxu0
  %v273 = vadd.f32 0.0, %v272
  %v274 = vpop.f32.mrf.mxu0
  %v275 = vpop.f32.mrf.mxu0
  %v276 = vadd.f32 0.0, %v275
  %v277 = vpop.f32.mrf.mxu0
  %278 = vdwg.mxu0
  %v279 = vadd.f32 %v38, %v217
  %v280 = vadd.f32 %v39, %v220
  %v281 = vadd.f32 %v40, %v225
  %v282 = vadd.f32 %v41, %v228
  %v283 = vadd.f32 %v42, %v233
  %v284 = vadd.f32 %v43, %v236
  %v285 = vadd.f32 %v44, %v241
  %v286 = vadd.f32 %v45, %v244
  %v287 = vadd.f32 %v46, %v249
  %v288 = vadd.f32 %v47, %v252
  %v289 = vadd.f32 %v48, %v257
  %v290 = vadd.f32 %v49, %v260
  %v291 = vadd.f32 %v50, %v265
  %v292 = vadd.f32 %v51, %v268
  %v293 = vadd.f32 %v52, %v273
  %v294 = vadd.f32 %v53, %v276
  %295 = vst [vmem:[#allocation2] sm:$0xff] %v279
  %296 = vst [vmem:[#allocation2 + $0x8] sm:$0xff] %v280
  %297 = vst [vmem:[#allocation2 + $0x10] sm:$0xff] %v281
  %298 = vst [vmem:[#allocation2 + $0x18] sm:$0xff] %v282
  %299 = vst [vmem:[#allocation2 + $0x20] sm:$0xff] %v283
  %300 = vst [vmem:[#allocation2 + $0x28] sm:$0xff] %v284
  %301 = vst [vmem:[#allocation2 + $0x30] sm:$0xff] %v285
  %302 = vst [vmem:[#allocation2 + $0x38] sm:$0xff] %v286
  %303 = vst [vmem:[#allocation2 + $0x40] sm:$0xff] %v287
  %304 = vst [vmem:[#allocation2 + $0x48] sm:$0xff] %v288
  %305 = vst [vmem:[#allocation2 + $0x50] sm:$0xff] %v289
  %306 = vst [vmem:[#allocation2 + $0x58] sm:$0xff] %v290
  %307 = vst [vmem:[#allocation2 + $0x60] sm:$0xff] %v291
  %308 = vst [vmem:[#allocation2 + $0x68] sm:$0xff] %v292
  %309 = vst [vmem:[#allocation2 + $0x70] sm:$0xff] %v293
  %310 = vst [vmem:[#allocation2 + $0x78] sm:$0xff] %v294
  // Predicated region
  $region22: #{up_residual_forward.1} parent=0 // pred_check
    %p311 = pneg %p18
  $region23: #{up_residual_forward.1} parent=0 // pred_check_branch
    %313 = sbr.rel (%p311) target = $region25
  $region24: #{up_residual_forward.1} parent=0 // pred_region
    %v314 = vld [vmem:[#allocation2] sm:$0xff]
    %v315 = vld [vmem:[#allocation2 + $0x8] sm:$0xff]
    %v316 = vld [vmem:[#allocation2 + $0x10] sm:$0xff]
    %v317 = vld [vmem:[#allocation2 + $0x18] sm:$0xff]
    %v318 = vld [vmem:[#allocation2 + $0x20] sm:$0xff]
    %v319 = vld [vmem:[#allocation2 + $0x28] sm:$0xff]
    %v320 = vld [vmem:[#allocation2 + $0x30] sm:$0xff]
    %v321 = vld [vmem:[#allocation2 + $0x38] sm:$0xff]
    %v322 = vld [vmem:[#allocation2 + $0x40] sm:$0xff]
    %v323 = vld [vmem:[#allocation2 + $0x48] sm:$0xff]
    %v324 = vld [vmem:[#allocation2 + $0x50] sm:$0xff]
    %v325 = vld [vmem:[#allocation2 + $0x58] sm:$0xff]
    %v326 = vld [vmem:[#allocation2 + $0x60] sm:$0xff]
    %v327 = vld [vmem:[#allocation2 + $0x68] sm:$0xff]
    %v328 = vld [vmem:[#allocation2 + $0x70] sm:$0xff]
    %v329 = vld [vmem:[#allocation2 + $0x78] sm:$0xff]
    %v330 = vld [vmem:[%s2] sm:$0x1]
    %v332 = vlaneseq
    %v333 = vshrl.u32 %v332, 7
    %v334 = vsub.s32 0, %v333
    %v335 = vrot.slane %v330, %v334
    %v337 = vadd.f32 %v314, %v335
    %v338 = vadd.f32 %v315, %v335
    %v339 = vadd.f32 %v316, %v335
    %v340 = vadd.f32 %v317, %v335
    %v341 = vadd.f32 %v318, %v335
    %v342 = vadd.f32 %v319, %v335
    %v343 = vadd.f32 %v320, %v335
    %v344 = vadd.f32 %v321, %v335
    %v345 = vadd.f32 %v322, %v335
    %v346 = vadd.f32 %v323, %v335
    %v347 = vadd.f32 %v324, %v335
    %v348 = vadd.f32 %v325, %v335
    %v349 = vadd.f32 %v326, %v335
    %v350 = vadd.f32 %v327, %v335
    %v351 = vadd.f32 %v328, %v335
    %v352 = vadd.f32 %v329, %v335
    %v353 = vld [vmem:[%s3] sm:$0xff]
    %v354 = vld [vmem:[%s3 + $0x8] sm:$0xff]
    %v355 = vld [vmem:[%s3 + $0x10] sm:$0xff]
    %v356 = vld [vmem:[%s3 + $0x18] sm:$0xff]
    %v357 = vld [vmem:[%s3 + $0x20] sm:$0xff]
    %v358 = vld [vmem:[%s3 + $0x28] sm:$0xff]
    %v359 = vld [vmem:[%s3 + $0x30] sm:$0xff]
    %v360 = vld [vmem:[%s3 + $0x38] sm:$0xff]
    %v361 = vld [vmem:[%s3 + $0x40] sm:$0xff]
    %v362 = vld [vmem:[%s3 + $0x48] sm:$0xff]
    %v363 = vld [vmem:[%s3 + $0x50] sm:$0xff]
    %v364 = vld [vmem:[%s3 + $0x58] sm:$0xff]
    %v365 = vld [vmem:[%s3 + $0x60] sm:$0xff]
    %v366 = vld [vmem:[%s3 + $0x68] sm:$0xff]
    %v367 = vld [vmem:[%s3 + $0x70] sm:$0xff]
    %v368 = vld [vmem:[%s3 + $0x78] sm:$0xff]
    %v369 = vadd.f32 %v337, %v353
    %v370 = vadd.f32 %v338, %v354
    %v371 = vadd.f32 %v339, %v355
    %v372 = vadd.f32 %v340, %v356
    %v373 = vadd.f32 %v341, %v357
    %v374 = vadd.f32 %v342, %v358
    %v375 = vadd.f32 %v343, %v359
    %v376 = vadd.f32 %v344, %v360
    %v377 = vadd.f32 %v345, %v361
    %v378 = vadd.f32 %v346, %v362
    %v379 = vadd.f32 %v347, %v363
    %v380 = vadd.f32 %v348, %v364
    %v381 = vadd.f32 %v349, %v365
    %v382 = vadd.f32 %v350, %v366
    %v383 = vadd.f32 %v351, %v367
    %v384 = vadd.f32 %v352, %v368
    %vm385 = vcmp.ge.f32.partialorder %v369, 0.0
    %vm386 = vcmp.ge.f32.partialorder %v370, 0.0
    %vm387 = vcmp.ge.f32.partialorder %v371, 0.0
    %vm388 = vcmp.ge.f32.partialorder %v372, 0.0
    %vm389 = vcmp.ge.f32.partialorder %v373, 0.0
    %vm390 = vcmp.ge.f32.partialorder %v374, 0.0
    %vm391 = vcmp.ge.f32.partialorder %v375, 0.0
    %vm392 = vcmp.ge.f32.partialorder %v376, 0.0
    %vm393 = vcmp.ge.f32.partialorder %v377, 0.0
    %vm394 = vcmp.ge.f32.partialorder %v378, 0.0
    %vm395 = vcmp.ge.f32.partialorder %v379, 0.0
    %vm396 = vcmp.ge.f32.partialorder %v380, 0.0
    %vm397 = vcmp.ge.f32.partialorder %v381, 0.0
    %vm398 = vcmp.ge.f32.partialorder %v382, 0.0
    %vm399 = vcmp.ge.f32.partialorder %v383, 0.0
    %vm400 = vcmp.ge.f32.partialorder %v384, 0.0
    %v401 = vmul.f32 %v369, 0.01
    %v402 = vmul.f32 %v370, 0.01
    %v403 = vmul.f32 %v371, 0.01
    %v404 = vmul.f32 %v372, 0.01
    %v405 = vmul.f32 %v373, 0.01
    %v406 = vmul.f32 %v374, 0.01
    %v407 = vmul.f32 %v375, 0.01
    %v408 = vmul.f32 %v376, 0.01
    %v409 = vmul.f32 %v377, 0.01
    %v410 = vmul.f32 %v378, 0.01
    %v411 = vmul.f32 %v379, 0.01
    %v412 = vmul.f32 %v380, 0.01
    %v413 = vmul.f32 %v381, 0.01
    %v414 = vmul.f32 %v382, 0.01
    %v415 = vmul.f32 %v383, 0.01
    %v416 = vmul.f32 %v384, 0.01
    %v417 = vsel %vm385, %v369, %v401
    %v418 = vsel %vm386, %v370, %v402
    %v419 = vsel %vm387, %v371, %v403
    %v420 = vsel %vm388, %v372, %v404
    %v421 = vsel %vm389, %v373, %v405
    %v422 = vsel %vm390, %v374, %v406
    %v423 = vsel %vm391, %v375, %v407
    %v424 = vsel %vm392, %v376, %v408
    %v425 = vsel %vm393, %v377, %v409
    %v426 = vsel %vm394, %v378, %v410
    %v427 = vsel %vm395, %v379, %v411
    %v428 = vsel %vm396, %v380, %v412
    %v429 = vsel %vm397, %v381, %v413
    %v430 = vsel %vm398, %v382, %v414
    %v431 = vsel %vm399, %v383, %v415
    %v432 = vsel %vm400, %v384, %v416
    %433 = vst [vmem:[%s4] sm:$0xff] %v417
    %434 = vst [vmem:[%s4 + $0x8] sm:$0xff] %v418
    %435 = vst [vmem:[%s4 + $0x10] sm:$0xff] %v419
    %436 = vst [vmem:[%s4 + $0x18] sm:$0xff] %v420
    %437 = vst [vmem:[%s4 + $0x20] sm:$0xff] %v421
    %438 = vst [vmem:[%s4 + $0x28] sm:$0xff] %v422
    %439 = vst [vmem:[%s4 + $0x30] sm:$0xff] %v423
    %440 = vst [vmem:[%s4 + $0x38] sm:$0xff] %v424
    %441 = vst [vmem:[%s4 + $0x40] sm:$0xff] %v425
    %442 = vst [vmem:[%s4 + $0x48] sm:$0xff] %v426
    %443 = vst [vmem:[%s4 + $0x50] sm:$0xff] %v427
    %444 = vst [vmem:[%s4 + $0x58] sm:$0xff] %v428
    %445 = vst [vmem:[%s4 + $0x60] sm:$0xff] %v429
    %446 = vst [vmem:[%s4 + $0x68] sm:$0xff] %v430
    %447 = vst [vmem:[%s4 + $0x70] sm:$0xff] %v431
    %448 = vst [vmem:[%s4 + $0x78] sm:$0xff] %v432
  $region25: #{up_residual_forward.1} parent=0 // pred_fallthru
    _
  // Predicated region
  $region26: #{up_residual_forward.1} parent=0 // pred_check
    _
  $region27: #{up_residual_forward.1} parent=0 // pred_check_branch
    %450 = sbr.rel (0) target = $region29
  $region28: #{up_residual_forward.1} parent=0 // pred_region
    _
  $region29: #{up_residual_forward.1} parent=0 // pred_fallthru
    _
  // Predicated region
  $region30: #{up_residual_forward.1} parent=0 // pred_check
    _
  $region31: #{up_residual_forward.1} parent=0 // pred_check_branch
    %452 = sbr.rel (0) target = $region33
  $region32: #{up_residual_forward.1} parent=0 // pred_region
    _
  $region33: #{up_residual_forward.1} parent=0 // pred_fallthru
    _

</llo_original>
